<compile_context>
chip_gen: v6e
topology: v6e:2x2x1
jax: 0.10.0
libtpu: 0.0.40
codegen_flags: <defaults>
</compile_context>

<pallas_src>
import jax
import jax.numpy as jnp
from jax.experimental import pallas as pl
from jax.experimental.pallas import tpu as pltpu


def _detect_kernel(x_ref, w_ref, b_ref, g_ref, a_ref, lin_ref, cst_ref,
                   mx_ref, my_ref, raw_ref, dec_ref):
    """One (batch, spatial-tile) step, channels-on-sublanes layout.

    x_ref:   (1, C1, TM)    NCHW activations, spatial flattened (no wrapper transpose)
    w_ref:   (C_OUT, C1)    1x1 conv weight (resident across the grid)
    b_ref:   (C_OUT, 1)     conv bias
    g_ref:   (2, TM)        per-pixel (x, y) grid offsets, pre-scaled by stride
    a_ref:   (C_OUT, 1)     quadratic coeff: 4*anchor*stride on w/h channels, else 0
    lin_ref: (C_OUT, 1)     linear coeff: 2*stride (xy), 0 (wh), 1 (scores)
    cst_ref: (C_OUT, 1)     constant: -0.5*stride (xy), else 0
    mx_ref:  (C_OUT, 1)     1 on x channels, else 0
    my_ref:  (C_OUT, 1)     1 on y channels, else 0
    raw_ref: (1, C_OUT, TM) raw conv output (pre-sigmoid)  -> Detect's x[i]
    dec_ref: (1, C_OUT, TM) decoded boxes / scores         -> Detect's z[i]
    """
    # 1x1 conv == one MXU matmul with f32 accumulation (kept f32 for bit-parity).
    acc = jnp.dot(w_ref[...], x_ref[0], preferred_element_type=jnp.float32)
    acc = acc + b_ref[...]
    raw_ref[0] = acc.astype(raw_ref.dtype)

    # Fused sigmoid (EUP) + decode as a per-channel polynomial — no iota/mod/where.
    s = jax.nn.sigmoid(acc)
    dec = (a_ref[...] * s + lin_ref[...]) * s + cst_ref[...]
    dec = dec + mx_ref[...] * g_ref[0:1, :] + my_ref[...] * g_ref[1:2, :]
    dec_ref[0] = dec.astype(dec_ref.dtype)


def _vmem_budget_bytes():
    """Generation-aware VMEM budget (roughly half of physical, capped at 64 MiB)."""
    try:
        cap = int(pltpu.get_tpu_info().vmem_capacity_bytes)
    except Exception:
        cap = 64 * 1024 * 1024            # conservative (v7x-sized) fallback
    return max(32 * 1024 * 1024, min(cap // 2, 64 * 1024 * 1024))


def _pick_tile(m, c1, c_out, budget_bytes, bs):
    """Largest legal spatial tile that fits the VMEM budget."""
    # Bytes per spatial row: double-buffered input (2*c1), two double-buffered f32
    # outputs (4*c_out), double-buffered grid rows (4 lanes).
    per_row = 4 * (2 * c1 + 4 * c_out + 4)
    # Resident weight + coefficient column vectors (padded to 128 lanes) + slack.
    fixed = 4 * c_out * (c1 + 8 * 128) + (2 << 20)
    cap = max(128, min((budget_bytes - fixed) // per_row, 2048))
    cap = (cap // 128) * 128
    if bs == 1 and m >= 256:
        # Keep >= 2 parallel grid steps so both v7x TensorCores get work.
        cap = min(cap, max(128, ((m // 2) // 128) * 128))
    if m <= cap:
        return m                          # whole level in one tile (full last dim)
    t = cap
    while t >= 128:
        if m % t == 0:                    # multiple of 128 that divides m exactly
            return t
        t -= 128
    return cap                            # non-dividing tile; Pallas masks boundary


def _detect_layer(x_nchw, w_oihw, bias, anchors_l, stride_l, nc, vmem_budget):
    bs, c1, ny, nx = x_nchw.shape
    na = anchors_l.shape[0]
    no = nc + 5
    c_out = na * no
    m = ny * nx
    stride_l = float(stride_l)

    # NCHW consumed directly; flattening spatial is a view, not an HBM round trip.
    x_flat = x_nchw.reshape(bs, c1, m)
    w2 = w_oihw.reshape(c_out, c1)
    b2 = bias.astype(jnp.float32).reshape(c_out, 1)

    # Per-pixel grid offsets (x, y), row-major y*nx + x, pre-scaled by stride.
    yv, xv = jnp.meshgrid(jnp.arange(ny, dtype=jnp.float32),
                          jnp.arange(nx, dtype=jnp.float32), indexing="ij")
    g = jnp.stack([xv.reshape(-1), yv.reshape(-1)], axis=0) * stride_l      # (2, m)

    # Per-output-channel decode coefficients as column vectors (computed once).
    jj = jnp.arange(c_out) % no
    aw = jnp.repeat(anchors_l[:, 0], no)
    ah = jnp.repeat(anchors_l[:, 1], no)
    a_vec = jnp.where(jj == 2, 4.0 * stride_l * aw,
                      jnp.where(jj == 3, 4.0 * stride_l * ah, 0.0))
    lin_vec = jnp.where(jj < 2, 2.0 * stride_l, jnp.where(jj < 4, 0.0, 1.0))
    cst_vec = jnp.where(jj < 2, -0.5 * stride_l, 0.0)
    mx_vec = (jj == 0).astype(jnp.float32)
    my_vec = (jj == 1).astype(jnp.float32)
    col = lambda v: v.astype(jnp.float32).reshape(c_out, 1)

    tm = _pick_tile(m, c1, c_out, vmem_budget, bs)
    grid = (bs, pl.cdiv(m, tm))

    const_spec = pl.BlockSpec((c_out, 1), lambda b, t: (0, 0))
    raw, dec = pl.pallas_call(
        _detect_kernel,
        out_shape=(jax.ShapeDtypeStruct((bs, c_out, m), jnp.float32),
                   jax.ShapeDtypeStruct((bs, c_out, m), jnp.float32)),
        grid=grid,
        in_specs=[
            pl.BlockSpec((1, c1, tm), lambda b, t: (b, 0, t)),
            pl.BlockSpec((c_out, c1), lambda b, t: (0, 0)),   # resident weight
            const_spec,                                       # bias
            pl.BlockSpec((2, tm), lambda b, t: (0, t)),       # grid offsets
            const_spec, const_spec, const_spec,               # a / lin / cst
            const_spec, const_spec,                           # mx / my
        ],
        out_specs=(pl.BlockSpec((1, c_out, tm), lambda b, t: (b, 0, t)),
                   pl.BlockSpec((1, c_out, tm), lambda b, t: (b, 0, t))),
        compiler_params=pltpu.CompilerParams(
            dimension_semantics=("parallel", "parallel"),
            vmem_limit_bytes=int(vmem_budget)),
    )(x_flat, w2, b2, g, col(a_vec), col(lin_vec), col(cst_vec),
      col(mx_vec), col(my_vec))

    # Layout-only restoration of the PyTorch output formats.
    raw = raw.reshape(bs, na, no, ny, nx).transpose(0, 1, 3, 4, 2)          # x[i]
    z = dec.reshape(bs, na, no, m).transpose(0, 1, 3, 2).reshape(bs, na * m, no)
    return z, raw


def detect_forward(xs, weights, biases, anchors, strides, nc):
    """Equivalent of Detect.forward(xs) in eval mode: returns (cat(z, 1), x_list)."""
    budget = _vmem_budget_bytes()
    z_list, x_list = [], []
    for i in range(len(xs)):
        z_i, x_i = _detect_layer(xs[i], weights[i], biases[i],
                                 anchors[i], strides[i], nc, budget)
        z_list.append(z_i)
        x_list.append(x_i)
    return jnp.concatenate(z_list, axis=1), x_list


def _reference_detect(xs, weights, biases, anchors, strides, nc):
    na = anchors.shape[1]
    no = nc + 5
    z, x_out = [], []
    for i, x in enumerate(xs):
        bs, c1, ny, nx = x.shape
        w = weights[i].reshape(na * no, c1)
        y = jnp.einsum("bcyx,oc->boyx", x, w) + biases[i][None, :, None, None]
        y = y.reshape(bs, na, no, ny, nx).transpose(0, 1, 3, 4, 2)
        x_out.append(y)
        s = jax.nn.sigmoid(y)
        yv, xv = jnp.meshgrid(jnp.arange(ny), jnp.arange(nx), indexing="ij")
        grid = jnp.stack((xv, yv), 2).astype(jnp.float32)[None, None]
        anchor_grid = (anchors[i] * strides[i]).reshape(1, na, 1, 1, 2)
        xy = (s[..., 0:2] * 2.0 - 0.5 + grid) * strides[i]
        wh = (s[..., 2:4] * 2.0) ** 2 * anchor_grid
        yy = jnp.concatenate([xy, wh, s[..., 4:]], -1)
        z.append(yy.reshape(bs, -1, no))
    return jnp.concatenate(z, 1), x_out


if __name__ == "__main__":
    nc = 3                      # small class count -> no = 8
    na = 3
    no = nc + 5
    c_out = na * no             # 24
    # YOLOv5 anchors (already divided by stride, as stored in the model buffer).
    anchors = jnp.array([
        [1.25, 1.625, 2.0, 3.75, 4.125, 2.875],
        [1.875, 3.8125, 3.875, 2.8125, 3.6875, 7.4375],
        [3.625, 2.8125, 4.875, 6.1875, 11.65625, 10.1875],
    ], dtype=jnp.float32).reshape(3, na, 2)
    strides = (8.0, 16.0, 32.0)
    ch = (8, 16, 32)
    spatials = ((16, 16), (8, 8), (4, 4))
    bs = 2

    key = jax.random.PRNGKey(0)
    xs, weights, biases = [], [], []
    for c1, (ny, nx) in zip(ch, spatials):
        key, kx, kw, kb = jax.random.split(key, 4)
        xs.append(jax.random.normal(kx, (bs, c1, ny, nx), dtype=jnp.float32))
        weights.append(jax.random.normal(kw, (c_out, c1, 1, 1),
                                         dtype=jnp.float32) * 0.1)
        biases.append(0.1 * jax.random.normal(kb, (c_out,), dtype=jnp.float32))

    z, x_raw = detect_forward(xs, weights, biases, anchors, strides, nc)
    z = jax.block_until_ready(z)

    z_ref, x_ref = _reference_detect(xs, weights, biases, anchors, strides, nc)

    total = sum(na * ny * nx for (ny, nx) in spatials)
    assert z.shape == (bs, total, no), z.shape
    assert jnp.allclose(z, z_ref, atol=2e-3, rtol=2e-3), float(
        jnp.max(jnp.abs(z - z_ref)))
    for a, b in zip(x_raw, x_ref):
        assert a.shape == b.shape, (a.shape, b.shape)
        assert jnp.allclose(a, b, atol=2e-4, rtol=2e-4), float(
            jnp.max(jnp.abs(a - b)))

    print("KERNEL_OK")
</pallas_src>

<mosaic_0001>
module attributes {stable_mosaic.version = 11 : i64} {
  func.func @_detect_kernel(%arg0: i32, %arg1: i32, %arg2: memref<1x8x256xf32, #tpu.memory_space<vmem>>, %arg3: memref<24x8xf32, #tpu.memory_space<vmem>>, %arg4: memref<24x1xf32, #tpu.memory_space<vmem>>, %arg5: memref<2x256xf32, #tpu.memory_space<vmem>>, %arg6: memref<24x1xf32, #tpu.memory_space<vmem>>, %arg7: memref<24x1xf32, #tpu.memory_space<vmem>>, %arg8: memref<24x1xf32, #tpu.memory_space<vmem>>, %arg9: memref<24x1xf32, #tpu.memory_space<vmem>>, %arg10: memref<24x1xf32, #tpu.memory_space<vmem>>, %arg11: memref<1x24x256xf32, #tpu.memory_space<vmem>>, %arg12: memref<1x24x256xf32, #tpu.memory_space<vmem>>) attributes {dimension_semantics = [#tpu.dimension_semantics<parallel>, #tpu.dimension_semantics<parallel>], iteration_bounds = array<i64: 2, 1>, scalar_prefetch = 0 : i64, scratch_operands = 0 : i64, tpu.core_type = #tpu.core_type<tc>, window_params = [{transform_indices = @transform_0, window_bounds = array<i64: 1, 8, 256>}, {pipeline_mode = #tpu.pipeline_mode<synchronous>, transform_indices = @transform_1, window_bounds = array<i64: 24, 8>}, {pipeline_mode = #tpu.pipeline_mode<synchronous>, transform_indices = @transform_2, window_bounds = array<i64: 24, 1>}, {transform_indices = @transform_3, window_bounds = array<i64: 2, 256>}, {pipeline_mode = #tpu.pipeline_mode<synchronous>, transform_indices = @transform_4, window_bounds = array<i64: 24, 1>}, {pipeline_mode = #tpu.pipeline_mode<synchronous>, transform_indices = @transform_5, window_bounds = array<i64: 24, 1>}, {pipeline_mode = #tpu.pipeline_mode<synchronous>, transform_indices = @transform_6, window_bounds = array<i64: 24, 1>}, {pipeline_mode = #tpu.pipeline_mode<synchronous>, transform_indices = @transform_7, window_bounds = array<i64: 24, 1>}, {pipeline_mode = #tpu.pipeline_mode<synchronous>, transform_indices = @transform_8, window_bounds = array<i64: 24, 1>}, {transform_indices = @transform_9, window_bounds = array<i64: 1, 24, 256>}, {transform_indices = @transform_10, window_bounds = array<i64: 1, 24, 256>}]} {
    %c0 = arith.constant 0 : index
    %c0_0 = arith.constant 0 : index
    %0 = vector.load %arg3[%c0, %c0_0] : memref<24x8xf32, #tpu.memory_space<vmem>>, vector<24x8xf32>
    %c0_1 = arith.constant 0 : index
    %c0_2 = arith.constant 0 : index
    %c0_3 = arith.constant 0 : index
    %1 = vector.load %arg2[%c0_1, %c0_2, %c0_3] : memref<1x8x256xf32, #tpu.memory_space<vmem>>, vector<1x8x256xf32>
    %2 = vector.shape_cast %1 : vector<1x8x256xf32> to vector<8x256xf32>
    %cst = arith.constant dense<0.000000e+00> : vector<24x256xf32>
    %3 = tpu.matmul %0, %2, %cst {dimension_numbers = #tpu.dot_dimension_numbers<[1], [0], [0], [1], [0, 0, 1, 1], [], []>} : vector<24x8xf32>, vector<8x256xf32>, vector<24x256xf32> -> vector<24x256xf32>
    %c0_4 = arith.constant 0 : index
    %c0_5 = arith.constant 0 : index
    %4 = vector.load %arg4[%c0_4, %c0_5] : memref<24x1xf32, #tpu.memory_space<vmem>>, vector<24x1xf32>
    %5 = vector.broadcast %4 : vector<24x1xf32> to vector<24x256xf32>
    %6 = arith.addf %3, %5 : vector<24x256xf32>
    %c0_6 = arith.constant 0 : index
    %c0_7 = arith.constant 0 : index
    %c0_8 = arith.constant 0 : index
    %7 = vector.load %arg11[%c0_6, %c0_7, %c0_8] : memref<1x24x256xf32, #tpu.memory_space<vmem>>, vector<1x24x256xf32>
    %8 = vector.shape_cast %7 : vector<1x24x256xf32> to vector<24x256xf32>
    %9 = vector.shape_cast %6 : vector<24x256xf32> to vector<1x24x256xf32>
    tpu.vector_store %arg11[%c0_6, %c0_7, %c0_8], %9 {strides = array<i32>} : memref<1x24x256xf32, #tpu.memory_space<vmem>>, vector<1x24x256xf32>,
    %10 = arith.negf %6 : vector<24x256xf32>
    %11 = math.exp %10 : vector<24x256xf32>
    %cst_9 = arith.constant 1.000000e+00 : f32
    %12 = vector.broadcast %cst_9 : f32 to vector<24x256xf32>
    %13 = arith.addf %12, %11 : vector<24x256xf32>
    %14 = arith.divf %12, %13 : vector<24x256xf32>
    %c0_10 = arith.constant 0 : index
    %c0_11 = arith.constant 0 : index
    %15 = vector.load %arg6[%c0_10, %c0_11] : memref<24x1xf32, #tpu.memory_space<vmem>>, vector<24x1xf32>
    %16 = vector.broadcast %15 : vector<24x1xf32> to vector<24x256xf32>
    %17 = arith.mulf %16, %14 : vector<24x256xf32>
    %c0_12 = arith.constant 0 : index
    %c0_13 = arith.constant 0 : index
    %18 = vector.load %arg7[%c0_12, %c0_13] : memref<24x1xf32, #tpu.memory_space<vmem>>, vector<24x1xf32>
    %19 = vector.broadcast %18 : vector<24x1xf32> to vector<24x256xf32>
    %20 = arith.addf %17, %19 : vector<24x256xf32>
    %21 = arith.mulf %20, %14 : vector<24x256xf32>
    %c0_14 = arith.constant 0 : index
    %c0_15 = arith.constant 0 : index
    %22 = vector.load %arg8[%c0_14, %c0_15] : memref<24x1xf32, #tpu.memory_space<vmem>>, vector<24x1xf32>
    %23 = vector.broadcast %22 : vector<24x1xf32> to vector<24x256xf32>
    %24 = arith.addf %21, %23 : vector<24x256xf32>
    %c0_16 = arith.constant 0 : index
    %c0_17 = arith.constant 0 : index
    %25 = vector.load %arg9[%c0_16, %c0_17] : memref<24x1xf32, #tpu.memory_space<vmem>>, vector<24x1xf32>
    %c0_18 = arith.constant 0 : index
    %c0_19 = arith.constant 0 : index
    %26 = vector.load %arg5[%c0_18, %c0_19] : memref<2x256xf32, #tpu.memory_space<vmem>>, vector<1x256xf32>
    %27 = vector.broadcast %25 : vector<24x1xf32> to vector<24x256xf32>
    %28 = vector.broadcast %26 : vector<1x256xf32> to vector<24x256xf32>
    %29 = arith.mulf %27, %28 : vector<24x256xf32>
    %30 = arith.addf %24, %29 : vector<24x256xf32>
    %c0_20 = arith.constant 0 : index
    %c0_21 = arith.constant 0 : index
    %31 = vector.load %arg10[%c0_20, %c0_21] : memref<24x1xf32, #tpu.memory_space<vmem>>, vector<24x1xf32>
    %c1 = arith.constant 1 : index
    %c0_22 = arith.constant 0 : index
    %32 = vector.load %arg5[%c1, %c0_22] : memref<2x256xf32, #tpu.memory_space<vmem>>, vector<1x256xf32>
    %33 = vector.broadcast %31 : vector<24x1xf32> to vector<24x256xf32>
    %34 = vector.broadcast %32 : vector<1x256xf32> to vector<24x256xf32>
    %35 = arith.mulf %33, %34 : vector<24x256xf32>
    %36 = arith.addf %30, %35 : vector<24x256xf32>
    %c0_23 = arith.constant 0 : index
    %c0_24 = arith.constant 0 : index
    %c0_25 = arith.constant 0 : index
    %37 = vector.load %arg12[%c0_23, %c0_24, %c0_25] : memref<1x24x256xf32, #tpu.memory_space<vmem>>, vector<1x24x256xf32>
    %38 = vector.shape_cast %37 : vector<1x24x256xf32> to vector<24x256xf32>
    %39 = vector.shape_cast %36 : vector<24x256xf32> to vector<1x24x256xf32>
    tpu.vector_store %arg12[%c0_23, %c0_24, %c0_25], %39 {strides = array<i32>} : memref<1x24x256xf32, #tpu.memory_space<vmem>>, vector<1x24x256xf32>,
    return
  }
  func.func @transform_0(%arg0: i32, %arg1: i32) -> (i32, i32, i32) {
    %c0_i32 = arith.constant 0 : i32
    %c0_i32_0 = arith.constant 0 : i32
    return %arg0, %c0_i32, %arg1 : i32, i32, i32
  }
  func.func @transform_1(%arg0: i32, %arg1: i32) -> (i32, i32) {
    %c0_i32 = arith.constant 0 : i32
    %c0_i32_0 = arith.constant 0 : i32
    %c0_i32_1 = arith.constant 0 : i32
    return %c0_i32, %c0_i32_0 : i32, i32
  }
  func.func @transform_2(%arg0: i32, %arg1: i32) -> (i32, i32) {
    %c0_i32 = arith.constant 0 : i32
    %c0_i32_0 = arith.constant 0 : i32
    %c0_i32_1 = arith.constant 0 : i32
    return %c0_i32, %c0_i32_0 : i32, i32
  }
  func.func @transform_3(%arg0: i32, %arg1: i32) -> (i32, i32) {
    %c0_i32 = arith.constant 0 : i32
    %c0_i32_0 = arith.constant 0 : i32
    return %c0_i32, %arg1 : i32, i32
  }
  func.func @transform_4(%arg0: i32, %arg1: i32) -> (i32, i32) {
    %c0_i32 = arith.constant 0 : i32
    %c0_i32_0 = arith.constant 0 : i32
    %c0_i32_1 = arith.constant 0 : i32
    return %c0_i32, %c0_i32_0 : i32, i32
  }
  func.func @transform_5(%arg0: i32, %arg1: i32) -> (i32, i32) {
    %c0_i32 = arith.constant 0 : i32
    %c0_i32_0 = arith.constant 0 : i32
    %c0_i32_1 = arith.constant 0 : i32
    return %c0_i32, %c0_i32_0 : i32, i32
  }
  func.func @transform_6(%arg0: i32, %arg1: i32) -> (i32, i32) {
    %c0_i32 = arith.constant 0 : i32
    %c0_i32_0 = arith.constant 0 : i32
    %c0_i32_1 = arith.constant 0 : i32
    return %c0_i32, %c0_i32_0 : i32, i32
  }
  func.func @transform_7(%arg0: i32, %arg1: i32) -> (i32, i32) {
    %c0_i32 = arith.constant 0 : i32
    %c0_i32_0 = arith.constant 0 : i32
    %c0_i32_1 = arith.constant 0 : i32
    return %c0_i32, %c0_i32_0 : i32, i32
  }
  func.func @transform_8(%arg0: i32, %arg1: i32) -> (i32, i32) {
    %c0_i32 = arith.constant 0 : i32
    %c0_i32_0 = arith.constant 0 : i32
    %c0_i32_1 = arith.constant 0 : i32
    return %c0_i32, %c0_i32_0 : i32, i32
  }
  func.func @transform_9(%arg0: i32, %arg1: i32) -> (i32, i32, i32) {
    %c0_i32 = arith.constant 0 : i32
    %c0_i32_0 = arith.constant 0 : i32
    return %arg0, %c0_i32, %arg1 : i32, i32, i32
  }
  func.func @transform_10(%arg0: i32, %arg1: i32) -> (i32, i32, i32) {
    %c0_i32 = arith.constant 0 : i32
    %c0_i32_0 = arith.constant 0 : i32
    return %arg0, %c0_i32, %arg1 : i32, i32, i32
  }
}

</mosaic_0001>

<llo_original>
// kernel: tpu_custom_call.1
$region0: #{tpu_custom_call.1}
  #allocation0 [shape = 'u32[]', space=smem, size = 0x4, offset = 0x4, fixed_abs, tag = 'smem constant byte address 0x4 - core index']
  #allocation1 [shape = 'u32[144,128]{1,0:T(1,128)}', space=vmem, size = 0x12000, scoped, tag = 'internal scratch']
  %s0 = inlined_call_operand.vmem [shape: f32[2,8,256], index: 0, kind: input, shape index: {}]
  %s1 = inlined_call_operand.vmem [shape: f32[24,8], index: 1, kind: input, shape index: {}]
  %s2 = inlined_call_operand.vmem [shape: f32[24,1], index: 2, kind: input, shape index: {}]
  %s3 = inlined_call_operand.vmem [shape: f32[2,256], index: 3, kind: input, shape index: {}]
  %s4 = inlined_call_operand.vmem [shape: f32[24,1], index: 4, kind: input, shape index: {}]
  %s5 = inlined_call_operand.vmem [shape: f32[24,1], index: 5, kind: input, shape index: {}]
  %s6 = inlined_call_operand.vmem [shape: f32[24,1], index: 6, kind: input, shape index: {}]
  %s7 = inlined_call_operand.vmem [shape: f32[24,1], index: 7, kind: input, shape index: {}]
  %s8 = inlined_call_operand.vmem [shape: f32[24,1], index: 8, kind: input, shape index: {}]
  %s9 = inlined_call_operand.hbm [shape: f32[2,24,256], index: 9, kind: output, shape index: {0}]
  %s10 = inlined_call_operand.hbm [shape: f32[2,24,256], index: 10, kind: output, shape index: {1}]
  %11 = xla_tuple %s9, %s10
  %s12 = sld [smem:[#allocation0]]
  $region77: #{tpu_custom_call.1} parent=0
    _
  %s14 = ssub.s32 1, %s12
  %s15 = scalar_select 0, %s14, %s12
  $region1: #{tpu_custom_call.1} parent=0
    #allocation2 [shape = 'u8[49152]{0}', space=vmem, size = 0xc000, scoped, tag = 'output window, operand 0']
    #allocation3 [shape = 's32[2]{0}', space=sflag, size = 0x8, scoped, tag = 'scoped memory for tpu_custom_call.1']
    #allocation4 [shape = 'u8[49152]{0}', space=vmem, size = 0xc000, scoped, tag = 'output window, operand 1']
    #allocation5 [shape = 's32[2]{0}', space=sflag, size = 0x8, scoped, tag = 'scoped memory for tpu_custom_call.1']
    %16 = vsyncpa [#allocation3], 0
    %s17 = scalar_lea.sflag [#allocation3], 1
    %18 = vsyncpa %s17, 0
    %19 = vsyncpa [#allocation5], 0
    %s20 = scalar_lea.sflag [#allocation5], 1
    %21 = vsyncpa %s20, 0
    loop: start=0, step=1, limit=4
    $region2: #{tpu_custom_call.1} parent=1 // loop_pre_header
      _
    $region3: #{tpu_custom_call.1} parent=1 // loop_header
      %s23 = sphi 0, %s27
      %p24 = scmp.ge.s32.totalorder %s23, 4
      %s30 = sphi 0, %s42
      %s31 = sphi 0, %s38
      %s32 = sphi 0, %s30
      %s33 = sphi 0, %s31
      %s34 = sphi 0, %s32
      %s35 = sphi 0, %s33
      %s47 = sphi 0, %s49
      %s50 = sphi 0, %s47
      %s51 = sphi 0, %s50
      %s67 = sphi 0, %s51
      %s71 = sphi 0, %s71
      %s73 = sphi 0, %s71
      %s74 = sphi 0, %s73
      %s88 = sphi 0, %s74
      %s92 = sphi 0, %s92
      %s94 = sphi 0, %s92
      %s95 = sphi 0, %s94
      %s109 = sphi 0, %s95
      %s115 = sphi 0, %s117
      %s118 = sphi 0, %s115
      %s119 = sphi 0, %s118
      %s135 = sphi 0, %s119
      %s139 = sphi 0, %s139
      %s141 = sphi 0, %s139
      %s142 = sphi 0, %s141
      %s156 = sphi 0, %s142
      %s160 = sphi 0, %s160
      %s162 = sphi 0, %s160
      %s163 = sphi 0, %s162
      %s177 = sphi 0, %s163
      %s181 = sphi 0, %s181
      %s183 = sphi 0, %s181
      %s184 = sphi 0, %s183
      %s198 = sphi 0, %s184
      %s202 = sphi 0, %s202
      %s204 = sphi 0, %s202
      %s205 = sphi 0, %s204
      %s219 = sphi 0, %s205
      %s223 = sphi 0, %s223
      %s225 = sphi 0, %s223
      %s226 = sphi 0, %s225
      %s240 = sphi 0, %s226
      %s248 = sphi 0, %s250
      %s251 = sphi 0, %s248
      %s252 = sphi 0, %s251
      %s268 = sphi 0, %s252
      %s276 = sphi 0, %s278
      %s279 = sphi 0, %s276
      %s280 = sphi 0, %s279
      %s296 = sphi 0, %s280
    $region4: #{tpu_custom_call.1} parent=1 // loop_header_branch
      %26 = sbr.rel (%p24) target = $region8
    $region5: #{tpu_custom_call.1} parent=1 // loop_body
      %s28 = ssub.s32 %s23, 1
      %s29 = ssub.s32 %s23, 2
      %s36 = sadd.s32 1, %s31
      %p37 = scmp.ge.s32.totalorder %s36, 1
      %s38 = scalar_select %p37, 0, %s36
      %s39 = sadd.s32 1, %s30
      %s40 = scalar_select %p37, %s39, %s30
      %p41 = scmp.ge.s32.totalorder %s40, 2
      %s42 = scalar_select %p41, 0, %s40
      %s43 = ssub.s32 %s30, %s42
      %s44 = ssub.s32 %s31, %s38
      %s45 = sor.u32 %s43, %s44
      %p46 = scmp.eq.s32.totalorder %s45, 0
      %s48 = sadd.s32 %s47, 1
      %s49 = scalar_select %p46, %s47, %s48
      %p52 = pneg %p46
      %p53 = scmp.eq.s32.totalorder %s23, 1
      %p54 = por %p52, %p53
      %p55 = scmp.ne.s32.totalorder %s47, %s50
      %p56 = scmp.eq.s32.totalorder %s23, 0
      %p57 = por %p55, %p56
      %p58 = scmp.ne.s32.totalorder %s47, %s50
      %p59 = scmp.eq.s32.totalorder %s28, 1
      %p60 = por %p58, %p59
      %p61 = scmp.ne.s32.totalorder %s50, %s51
      %p62 = scmp.eq.s32.totalorder %s28, 0
      %p63 = por %p61, %p62
      %p64 = scmp.ne.s32.totalorder %s50, %s51
      %p65 = scmp.eq.s32.totalorder %s29, 1
      %p66 = por %p64, %p65
      %p68 = scmp.ne.s32.totalorder %s51, %s67
      %p69 = scmp.eq.s32.totalorder %s29, 0
      %p70 = por %p68, %p69
      %s72 = sadd.s32 %s71, 1
      %p75 = scmp.eq.s32.totalorder %s23, 1
      %p76 = scmp.ne.s32.totalorder %s71, %s73
      %p77 = scmp.eq.s32.totalorder %s23, 0
      %p78 = por %p76, %p77
      %p79 = scmp.ne.s32.totalorder %s71, %s73
      %p80 = scmp.eq.s32.totalorder %s28, 1
      %p81 = por %p79, %p80
      %p82 = scmp.ne.s32.totalorder %s73, %s74
      %p83 = scmp.eq.s32.totalorder %s28, 0
      %p84 = por %p82, %p83
      %p85 = scmp.ne.s32.totalorder %s73, %s74
      %p86 = scmp.eq.s32.totalorder %s29, 1
      %p87 = por %p85, %p86
      %p89 = scmp.ne.s32.totalorder %s74, %s88
      %p90 = scmp.eq.s32.totalorder %s29, 0
      %p91 = por %p89, %p90
      %s93 = sadd.s32 %s92, 1
      %p96 = scmp.eq.s32.totalorder %s23, 1
      %p97 = scmp.ne.s32.totalorder %s92, %s94
      %p98 = scmp.eq.s32.totalorder %s23, 0
      %p99 = por %p97, %p98
      %p100 = scmp.ne.s32.totalorder %s92, %s94
      %p101 = scmp.eq.s32.totalorder %s28, 1
      %p102 = por %p100, %p101
      %p103 = scmp.ne.s32.totalorder %s94, %s95
      %p104 = scmp.eq.s32.totalorder %s28, 0
      %p105 = por %p103, %p104
      %p106 = scmp.ne.s32.totalorder %s94, %s95
      %p107 = scmp.eq.s32.totalorder %s29, 1
      %p108 = por %p106, %p107
      %p110 = scmp.ne.s32.totalorder %s95, %s109
      %p111 = scmp.eq.s32.totalorder %s29, 0
      %p112 = por %p110, %p111
      %s113 = ssub.s32 %s31, %s38
      %p114 = scmp.eq.s32.totalorder %s113, 0
      %s116 = sadd.s32 %s115, 1
      %s117 = scalar_select %p114, %s115, %s116
      %p120 = pneg %p114
      %p121 = scmp.eq.s32.totalorder %s23, 1
      %p122 = por %p120, %p121
      %p123 = scmp.ne.s32.totalorder %s115, %s118
      %p124 = scmp.eq.s32.totalorder %s23, 0
      %p125 = por %p123, %p124
      %p126 = scmp.ne.s32.totalorder %s115, %s118
      %p127 = scmp.eq.s32.totalorder %s28, 1
      %p128 = por %p126, %p127
      %p129 = scmp.ne.s32.totalorder %s118, %s119
      %p130 = scmp.eq.s32.totalorder %s28, 0
      %p131 = por %p129, %p130
      %p132 = scmp.ne.s32.totalorder %s118, %s119
      %p133 = scmp.eq.s32.totalorder %s29, 1
      %p134 = por %p132, %p133
      %p136 = scmp.ne.s32.totalorder %s119, %s135
      %p137 = scmp.eq.s32.totalorder %s29, 0
      %p138 = por %p136, %p137
      %s140 = sadd.s32 %s139, 1
      %p143 = scmp.eq.s32.totalorder %s23, 1
      %p144 = scmp.ne.s32.totalorder %s139, %s141
      %p145 = scmp.eq.s32.totalorder %s23, 0
      %p146 = por %p144, %p145
      %p147 = scmp.ne.s32.totalorder %s139, %s141
      %p148 = scmp.eq.s32.totalorder %s28, 1
      %p149 = por %p147, %p148
      %p150 = scmp.ne.s32.totalorder %s141, %s142
      %p151 = scmp.eq.s32.totalorder %s28, 0
      %p152 = por %p150, %p151
      %p153 = scmp.ne.s32.totalorder %s141, %s142
      %p154 = scmp.eq.s32.totalorder %s29, 1
      %p155 = por %p153, %p154
      %p157 = scmp.ne.s32.totalorder %s142, %s156
      %p158 = scmp.eq.s32.totalorder %s29, 0
      %p159 = por %p157, %p158
      %s161 = sadd.s32 %s160, 1
      %p164 = scmp.eq.s32.totalorder %s23, 1
      %p165 = scmp.ne.s32.totalorder %s160, %s162
      %p166 = scmp.eq.s32.totalorder %s23, 0
      %p167 = por %p165, %p166
      %p168 = scmp.ne.s32.totalorder %s160, %s162
      %p169 = scmp.eq.s32.totalorder %s28, 1
      %p170 = por %p168, %p169
      %p171 = scmp.ne.s32.totalorder %s162, %s163
      %p172 = scmp.eq.s32.totalorder %s28, 0
      %p173 = por %p171, %p172
      %p174 = scmp.ne.s32.totalorder %s162, %s163
      %p175 = scmp.eq.s32.totalorder %s29, 1
      %p176 = por %p174, %p175
      %p178 = scmp.ne.s32.totalorder %s163, %s177
      %p179 = scmp.eq.s32.totalorder %s29, 0
      %p180 = por %p178, %p179
      %s182 = sadd.s32 %s181, 1
      %p185 = scmp.eq.s32.totalorder %s23, 1
      %p186 = scmp.ne.s32.totalorder %s181, %s183
      %p187 = scmp.eq.s32.totalorder %s23, 0
      %p188 = por %p186, %p187
      %p189 = scmp.ne.s32.totalorder %s181, %s183
      %p190 = scmp.eq.s32.totalorder %s28, 1
      %p191 = por %p189, %p190
      %p192 = scmp.ne.s32.totalorder %s183, %s184
      %p193 = scmp.eq.s32.totalorder %s28, 0
      %p194 = por %p192, %p193
      %p195 = scmp.ne.s32.totalorder %s183, %s184
      %p196 = scmp.eq.s32.totalorder %s29, 1
      %p197 = por %p195, %p196
      %p199 = scmp.ne.s32.totalorder %s184, %s198
      %p200 = scmp.eq.s32.totalorder %s29, 0
      %p201 = por %p199, %p200
      %s203 = sadd.s32 %s202, 1
      %p206 = scmp.eq.s32.totalorder %s23, 1
      %p207 = scmp.ne.s32.totalorder %s202, %s204
      %p208 = scmp.eq.s32.totalorder %s23, 0
      %p209 = por %p207, %p208
      %p210 = scmp.ne.s32.totalorder %s202, %s204
      %p211 = scmp.eq.s32.totalorder %s28, 1
      %p212 = por %p210, %p211
      %p213 = scmp.ne.s32.totalorder %s204, %s205
      %p214 = scmp.eq.s32.totalorder %s28, 0
      %p215 = por %p213, %p214
      %p216 = scmp.ne.s32.totalorder %s204, %s205
      %p217 = scmp.eq.s32.totalorder %s29, 1
      %p218 = por %p216, %p217
      %p220 = scmp.ne.s32.totalorder %s205, %s219
      %p221 = scmp.eq.s32.totalorder %s29, 0
      %p222 = por %p220, %p221
      %s224 = sadd.s32 %s223, 1
      %p227 = scmp.eq.s32.totalorder %s23, 1
      %p228 = scmp.ne.s32.totalorder %s223, %s225
      %p229 = scmp.eq.s32.totalorder %s23, 0
      %p230 = por %p228, %p229
      %p231 = scmp.ne.s32.totalorder %s223, %s225
      %p232 = scmp.eq.s32.totalorder %s28, 1
      %p233 = por %p231, %p232
      %p234 = scmp.ne.s32.totalorder %s225, %s226
      %p235 = scmp.eq.s32.totalorder %s28, 0
      %p236 = por %p234, %p235
      %p237 = scmp.ne.s32.totalorder %s225, %s226
      %p238 = scmp.eq.s32.totalorder %s29, 1
      %p239 = por %p237, %p238
      %p241 = scmp.ne.s32.totalorder %s226, %s240
      %p242 = scmp.eq.s32.totalorder %s29, 0
      %p243 = por %p241, %p242
      %s244 = ssub.s32 %s30, %s42
      %s245 = ssub.s32 %s31, %s38
      %s246 = sor.u32 %s244, %s245
      %p247 = scmp.eq.s32.totalorder %s246, 0
      %s249 = sadd.s32 %s248, 1
      %s250 = scalar_select %p247, %s248, %s249
      %p253 = pneg %p247
      %p254 = scmp.eq.s32.totalorder %s23, 1
      %p255 = por %p253, %p254
      %p256 = scmp.ne.s32.totalorder %s248, %s251
      %p257 = scmp.eq.s32.totalorder %s23, 0
      %p258 = por %p256, %p257
      %p259 = scmp.ne.s32.totalorder %s248, %s251
      %p260 = scmp.eq.s32.totalorder %s28, 1
      %p261 = por %p259, %p260
      %p262 = scmp.ne.s32.totalorder %s251, %s252
      %p263 = scmp.eq.s32.totalorder %s28, 0
      %p264 = por %p262, %p263
      %p265 = scmp.ne.s32.totalorder %s251, %s252
      %p266 = scmp.eq.s32.totalorder %s29, 1
      %p267 = por %p265, %p266
      %p269 = scmp.ne.s32.totalorder %s252, %s268
      %p270 = scmp.eq.s32.totalorder %s29, 0
      %p271 = por %p269, %p270
      %s272 = ssub.s32 %s30, %s42
      %s273 = ssub.s32 %s31, %s38
      %s274 = sor.u32 %s272, %s273
      %p275 = scmp.eq.s32.totalorder %s274, 0
      %s277 = sadd.s32 %s276, 1
      %s278 = scalar_select %p275, %s276, %s277
      %p281 = pneg %p275
      %p282 = scmp.eq.s32.totalorder %s23, 1
      %p283 = por %p281, %p282
      %p284 = scmp.ne.s32.totalorder %s276, %s279
      %p285 = scmp.eq.s32.totalorder %s23, 0
      %p286 = por %p284, %p285
      %p287 = scmp.ne.s32.totalorder %s276, %s279
      %p288 = scmp.eq.s32.totalorder %s28, 1
      %p289 = por %p287, %p288
      %p290 = scmp.ne.s32.totalorder %s279, %s280
      %p291 = scmp.eq.s32.totalorder %s28, 0
      %p292 = por %p290, %p291
      %p293 = scmp.ne.s32.totalorder %s279, %s280
      %p294 = scmp.eq.s32.totalorder %s29, 1
      %p295 = por %p293, %p294
      %p297 = scmp.ne.s32.totalorder %s280, %s296
      %p298 = scmp.eq.s32.totalorder %s29, 0
      %p299 = por %p297, %p298
      %p300 = scmp.le.s32.totalorder 1, %s23
      %p301 = scmp.lt.s32.totalorder %s23, 3
      %p302 = pnand %p300, %p301
      %p303 = pneg %p302
      // Predicated region
      $region9: #{tpu_custom_call.1} parent=5 // pred_check
        _
      $region10: #{tpu_custom_call.1} parent=5 // pred_check_branch
        %305 = sbr.rel (%p302) target = $region12
      $region11: #{tpu_custom_call.1} parent=5 // pred_region
        %s306 = ssub.s32 %s23, 1
        // Predicated region
        $region13: #{tpu_custom_call.1} parent=11 // pred_check
          %p307 = pneg %p84
        $region14: #{tpu_custom_call.1} parent=11 // pred_check_branch
          %309 = sbr.rel (%p307) target = $region16
        $region15: #{tpu_custom_call.1} parent=11 // pred_region
          _
        $region16: #{tpu_custom_call.1} parent=11 // pred_fallthru
          _
        // Predicated region
        $region17: #{tpu_custom_call.1} parent=11 // pred_check
          %p310 = pneg %p105
        $region18: #{tpu_custom_call.1} parent=11 // pred_check_branch
          %312 = sbr.rel (%p310) target = $region20
        $region19: #{tpu_custom_call.1} parent=11 // pred_region
          _
        $region20: #{tpu_custom_call.1} parent=11 // pred_fallthru
          _
        // Predicated region
        $region21: #{tpu_custom_call.1} parent=11 // pred_check
          %p313 = pneg %p131
        $region22: #{tpu_custom_call.1} parent=11 // pred_check_branch
          %315 = sbr.rel (%p313) target = $region24
        $region23: #{tpu_custom_call.1} parent=11 // pred_region
          %s316 = smul.u32 2, %s33
          %p317 = scmp.lt.s32.totalorder %s316, 1
          %s318 = scalar_select %p317, %s316, 1
          %s319 = smul.addr %s318, 2
          %s320 = scalar_lea.vmem %s3, %s319
          %s321 = smul.u32 2, %s33
        $region24: #{tpu_custom_call.1} parent=11 // pred_fallthru
          _
        // Predicated region
        $region25: #{tpu_custom_call.1} parent=11 // pred_check
          %p322 = pneg %p152
        $region26: #{tpu_custom_call.1} parent=11 // pred_check_branch
          %324 = sbr.rel (%p322) target = $region28
        $region27: #{tpu_custom_call.1} parent=11 // pred_region
          _
        $region28: #{tpu_custom_call.1} parent=11 // pred_fallthru
          _
        // Predicated region
        $region29: #{tpu_custom_call.1} parent=11 // pred_check
          %p325 = pneg %p173
        $region30: #{tpu_custom_call.1} parent=11 // pred_check_branch
          %327 = sbr.rel (%p325) target = $region32
        $region31: #{tpu_custom_call.1} parent=11 // pred_region
          _
        $region32: #{tpu_custom_call.1} parent=11 // pred_fallthru
          _
        // Predicated region
        $region33: #{tpu_custom_call.1} parent=11 // pred_check
          %p328 = pneg %p194
        $region34: #{tpu_custom_call.1} parent=11 // pred_check_branch
          %330 = sbr.rel (%p328) target = $region36
        $region35: #{tpu_custom_call.1} parent=11 // pred_region
          _
        $region36: #{tpu_custom_call.1} parent=11 // pred_fallthru
          _
        // Predicated region
        $region37: #{tpu_custom_call.1} parent=11 // pred_check
          %p331 = pneg %p215
        $region38: #{tpu_custom_call.1} parent=11 // pred_check_branch
          %333 = sbr.rel (%p331) target = $region40
        $region39: #{tpu_custom_call.1} parent=11 // pred_region
          _
        $region40: #{tpu_custom_call.1} parent=11 // pred_fallthru
          _
        // Predicated region
        $region41: #{tpu_custom_call.1} parent=11 // pred_check
          %p334 = pneg %p236
        $region42: #{tpu_custom_call.1} parent=11 // pred_check_branch
          %336 = sbr.rel (%p334) target = $region44
        $region43: #{tpu_custom_call.1} parent=11 // pred_region
          _
        $region44: #{tpu_custom_call.1} parent=11 // pred_fallthru
          _
      $region12: #{tpu_custom_call.1} parent=5 // pred_fallthru
        _
      %p337 = scmp.lt.s32.totalorder %s23, 2
      // Predicated region
      $region45: #{tpu_custom_call.1} parent=5 // pred_check
        %p338 = pneg %p337
      $region46: #{tpu_custom_call.1} parent=5 // pred_check_branch
        %340 = sbr.rel (%p338) target = $region48
      $region47: #{tpu_custom_call.1} parent=5 // pred_region
        // Predicated region
        $region49: #{tpu_custom_call.1} parent=47 // pred_check
          %p341 = pneg %p57
        $region50: #{tpu_custom_call.1} parent=47 // pred_check_branch
          %343 = sbr.rel (%p341) target = $region52
        $region51: #{tpu_custom_call.1} parent=47 // pred_region
          %s344 = smul.u32 2, %s31
          %p345 = scmp.lt.s32.totalorder %s30, 1
          %s346 = scalar_select %p345, %s30, 1
          %p347 = scmp.lt.s32.totalorder %s344, 1
          %s348 = scalar_select %p347, %s344, 1
          %s349 = smul.addr %s346, 2
          %s350 = sadd.s32 %s348, %s349
          %s351 = smul.addr %s350, 8
          %s352 = scalar_lea.vmem %s0, %s351
          %s353 = smul.u32 2, %s31
        $region52: #{tpu_custom_call.1} parent=47 // pred_fallthru
          _
      $region48: #{tpu_custom_call.1} parent=5 // pred_fallthru
        _
      %p354 = scmp.le.s32.totalorder 1, %s23
      %p355 = scmp.lt.s32.totalorder %s23, 3
      %p356 = pnand %p354, %p355
      %p357 = pneg %p356
      // Predicated region
      $region53: #{tpu_custom_call.1} parent=5 // pred_check
        _
      $region54: #{tpu_custom_call.1} parent=5 // pred_check_branch
        %359 = sbr.rel (%p356) target = $region56
      $region55: #{tpu_custom_call.1} parent=5 // pred_region
        %s360 = ssub.s32 %s23, 1
        %s361 = smul.u32 2, %s33
        %p362 = scmp.lt.s32.totalorder %s32, 1
        %s363 = scalar_select %p362, %s32, 1
        %p364 = scmp.lt.s32.totalorder %s361, 1
        %s365 = scalar_select %p364, %s361, 1
        %s366 = smul.addr %s363, 2
        %s367 = sadd.s32 %s365, %s366
        %s368 = smul.addr %s367, 8
        %s369 = scalar_lea.vmem %s0, %s368
        %p370 = pneg %p63
        %p371 = pneg %p60
        %p372 = pneg %p84
        %p373 = pneg %p81
        %p374 = pneg %p105
        %p375 = pneg %p102
        %s376 = smul.u32 2, %s33
        %p377 = scmp.lt.s32.totalorder %s376, 1
        %s378 = scalar_select %p377, %s376, 1
        %s379 = smul.addr %s378, 2
        %s380 = scalar_lea.vmem %s3, %s379
        %p381 = pneg %p131
        %p382 = pneg %p128
        %p383 = pneg %p152
        %p384 = pneg %p149
        %p385 = pneg %p173
        %p386 = pneg %p170
        %p387 = pneg %p194
        %p388 = pneg %p191
        %p389 = pneg %p215
        %p390 = pneg %p212
        %p391 = pneg %p236
        %p392 = pneg %p233
        %p393 = pneg %p264
        %p394 = pneg %p261
        %s395 = sand.u32 %s251, 1
        %s396 = scalar_lea.sflag [#allocation3], %s395
        %s397 = sand.u32 %s251, 1
        %s398 = smul.addr %s397, 48
        %s399 = scalar_lea.vmem [#allocation2], %s398
        %p400 = pneg %p292
        %p401 = pneg %p289
        %s402 = sand.u32 %s279, 1
        %s403 = scalar_lea.sflag [#allocation5], %s402
        %s404 = sand.u32 %s279, 1
        %s405 = smul.addr %s404, 48
        %s406 = scalar_lea.vmem [#allocation4], %s405
        %s407 = smul.u32 2, %s33
        %p408 = scmp.lt.s32.totalorder %s32, 1
        %s409 = scalar_select %p408, %s32, 1
        %p410 = scmp.lt.s32.totalorder %s407, 1
        %s411 = scalar_select %p410, %s407, 1
        %s412 = smul.addr %s409, 2
        %s413 = sadd.s32 %s411, %s412
        %s414 = smul.addr %s413, 8
        %s415 = scalar_lea.vmem %s0, %s414
        %s416 = smul.u32 2, %s33
        %s417 = smul.u32 2, %s33
        %p418 = scmp.lt.s32.totalorder %s417, 1
        %s419 = scalar_select %p418, %s417, 1
        %s420 = smul.addr %s419, 2
        %s421 = scalar_lea.vmem %s3, %s420
        %s422 = smul.u32 2, %s33
        %s423 = smul.u32 2, %s33
        %s424 = smul.u32 2, %s33
        %v425 = vld [vmem:[%s1] sm:$0xff]
        %v426 = vld [vmem:[%s1 + $0x8] sm:$0xff]
        %v427 = vld [vmem:[%s1 + $0x10] sm:$0xff]
        %v428 = vld [vmem:[%s415] sm:$0xff]
        %v429 = vld [vmem:[%s415 + $0x8] sm:$0xff]
        %v430 = vld [vmem:[%s2] sm:$0xff]
        %v431 = vld [vmem:[%s2 + $0x8] sm:$0xff]
        %v432 = vld [vmem:[%s2 + $0x10] sm:$0xff]
        %434 = vset.pattern.permute.xlu0 0
        %435 = vperm.xlu0 %434, %v430
        %v436 = vpop.permute.xlu0 %435
        %439 = vset.pattern.permute.xlu0 0
        %440 = vperm.xlu0 %439, %v431
        %v441 = vpop.permute.xlu0 %440
        %444 = vset.pattern.permute.xlu0 0
        %445 = vperm.xlu0 %444, %v432
        %v446 = vpop.permute.xlu0 %445
        %vm448 = vcmask 64512
        %v450 = vsel %vm448, %v425, 0
        %v453 = vsel %vm448, %v426, 0
        %v456 = vsel %vm448, %v427, 0
        %458 = vmatprep.subr.mxu0 0.0
        %459 = vmatpush1.msra.mxu0 0.0
        %460 = vmatprep.subr.mxu0 0.0
        %461 = vmatpush1.msra.mxu0 0.0
        %462 = vmatprep.subr.mxu0 0.0
        %463 = vmatpush1.msra.mxu0 0.0
        %464 = vmatprep.subr.mxu0 0.0
        %465 = vmatpush1.msra.mxu0 0.0
        %466 = vmatprep.subr.mxu0 0.0
        %467 = vmatpush1.msra.mxu0 0.0
        %468 = vmatprep.subr.mxu0 0.0
        %469 = vmatpush1.msra.mxu0 0.0
        %470 = vmatprep.subr.mxu0 0.0
        %471 = vmatpush1.msra.mxu0 0.0
        %472 = vmatprep.subr.mxu0 0.0
        %473 = vmatpush1.msra.mxu0 0.0
        %474 = vmatprep.subr.mxu0 0.0
        %475 = vmatpush1.msra.mxu0 0.0
        %476 = vmatprep.subr.mxu0 0.0
        %477 = vmatpush1.msra.mxu0 0.0
        %478 = vmatprep.subr.mxu0 0.0
        %479 = vmatpush1.msra.mxu0 0.0
        %480 = vmatprep.subr.mxu0 0.0
        %481 = vmatpush1.msra.mxu0 0.0
        %482 = vmatprep.subr.mxu0 0.0
        %483 = vmatpush1.msra.mxu0 0.0
        %484 = vmatprep.subr.mxu0 0.0
        %485 = vmatpush1.msra.mxu0 0.0
        %486 = vmatprep.subr.mxu0 0.0
        %487 = vmatpush1.msra.mxu0 0.0
        %488 = vmatprep.subr.mxu0 %v429
        %489 = vmatpush1.msra.mxu0 %v428
        %490 = vmatprep.subr.mxu0 0.0
        %491 = vmatpush2.msra.mxu0 0.0
        %492 = vmatprep.subr.mxu0 0.0
        %493 = vmatpush2.msra.mxu0 0.0
        %494 = vmatprep.subr.mxu0 0.0
        %495 = vmatpush2.msra.mxu0 0.0
        %496 = vmatprep.subr.mxu0 0.0
        %497 = vmatpush2.msra.mxu0 0.0
        %498 = vmatprep.subr.mxu0 0.0
        %499 = vmatpush2.msra.mxu0 0.0
        %500 = vmatprep.subr.mxu0 0.0
        %501 = vmatpush2.msra.mxu0 0.0
        %502 = vmatprep.subr.mxu0 0.0
        %503 = vmatpush2.msra.mxu0 0.0
        %504 = vmatprep.subr.mxu0 0.0
        %505 = vmatpush2.msra.mxu0 0.0
        %506 = vmatprep.subr.mxu0 0.0
        %507 = vmatpush2.msra.mxu0 0.0
        %508 = vmatprep.subr.mxu0 0.0
        %509 = vmatpush2.msra.mxu0 0.0
        %510 = vmatprep.subr.mxu0 0.0
        %511 = vmatpush2.msra.mxu0 0.0
        %512 = vmatprep.subr.mxu0 0.0
        %513 = vmatpush2.msra.mxu0 0.0
        %514 = vmatprep.subr.mxu0 0.0
        %515 = vmatpush2.msra.mxu0 0.0
        %516 = vmatprep.subr.mxu0 0.0
        %517 = vmatpush2.msra.mxu0 0.0
        %518 = vmatprep.subr.mxu0 0.0
        %519 = vmatpush2.msra.mxu0 0.0
        %520 = vmatprep.subr.mxu0 0.0
        %521 = vmatpush2.msra.mxu0 0.0
        %522 = vmatprep.mubr.f32.mxu0 0.0
        %523 = vmatmul.mubr.f32.gmra.mxu0 %v450
        %v524 = vpop.f32.mrf.mxu0
        %v525 = vadd.f32 %v436, %v524
        %v526 = vpop.f32.mrf.mxu0
        %v527 = vadd.f32 %v436, %v526
        %528 = vmatprep.mubr.f32.mxu0 0.0
        %529 = vmatmul.mubr.f32.gmra.mxu0 %v453
        %v530 = vpop.f32.mrf.mxu0
        %v531 = vadd.f32 %v441, %v530
        %v532 = vpop.f32.mrf.mxu0
        %v533 = vadd.f32 %v441, %v532
        %534 = vmatprep.mubr.f32.mxu0 0.0
        %535 = vmatmul.mubr.f32.gmra.mxu0 %v456
        %v536 = vpop.f32.mrf.mxu0
        %v537 = vadd.f32 %v446, %v536
        %v538 = vpop.f32.mrf.mxu0
        %v539 = vadd.f32 %v446, %v538
        %540 = vdwg.mxu0
        %541 = vst [vmem:[%s399] sm:$0xff] %v525
        %542 = vst [vmem:[%s399 + $0x8] sm:$0xff] %v527
        %543 = vst [vmem:[%s399 + $0x10] sm:$0xff] %v531
        %544 = vst [vmem:[%s399 + $0x18] sm:$0xff] %v533
        %545 = vst [vmem:[%s399 + $0x20] sm:$0xff] %v537
        %546 = vst [vmem:[%s399 + $0x28] sm:$0xff] %v539
        %v547 = vxor.u32 %v525, 2147483648
        %v548 = vxor.u32 %v527, 2147483648
        %v549 = vxor.u32 %v531, 2147483648
        %v550 = vxor.u32 %v533, 2147483648
        %v551 = vxor.u32 %v537, 2147483648
        %v552 = vxor.u32 %v539, 2147483648
        %v553 = vmul.f32 %v547, 1.442695
        %v554 = vpow.pop %v553
        %v555 = vmul.f32 %v548, 1.442695
        %v556 = vpow.pop %v555
        %v557 = vmul.f32 %v549, 1.442695
        %v558 = vpow.pop %v557
        %v559 = vmul.f32 %v550, 1.442695
        %v560 = vpow.pop %v559
        %v561 = vmul.f32 %v551, 1.442695
        %v562 = vpow.pop %v561
        %v563 = vmul.f32 %v552, 1.442695
        %v564 = vpow.pop %v563
        %v565 = vadd.f32 %v554, 1.0
        %v566 = vadd.f32 %v556, 1.0
        %v567 = vadd.f32 %v558, 1.0
        %v568 = vadd.f32 %v560, 1.0
        %v569 = vadd.f32 %v562, 1.0
        %v570 = vadd.f32 %v564, 1.0
        %v571 = vrcp.pop %v565
        %v572 = vmul.f32 1.0, %v571
        %v573 = vrcp.pop %v566
        %v574 = vmul.f32 1.0, %v573
        %v575 = vrcp.pop %v567
        %v576 = vmul.f32 1.0, %v575
        %v577 = vrcp.pop %v568
        %v578 = vmul.f32 1.0, %v577
        %v579 = vrcp.pop %v569
        %v580 = vmul.f32 1.0, %v579
        %v581 = vrcp.pop %v570
        %v582 = vmul.f32 1.0, %v581
        %v583 = vld [vmem:[%s4] sm:$0xff]
        %v584 = vld [vmem:[%s4 + $0x8] sm:$0xff]
        %v585 = vld [vmem:[%s4 + $0x10] sm:$0xff]
        %587 = vset.pattern.permute.xlu0 0
        %588 = vperm.xlu0 %587, %v583
        %v589 = vpop.permute.xlu0 %588
        %592 = vset.pattern.permute.xlu0 0
        %593 = vperm.xlu0 %592, %v584
        %v594 = vpop.permute.xlu0 %593
        %597 = vset.pattern.permute.xlu0 0
        %598 = vperm.xlu0 %597, %v585
        %v599 = vpop.permute.xlu0 %598
        %v601 = vmul.f32 %v589, %v572
        %v602 = vmul.f32 %v589, %v574
        %v603 = vmul.f32 %v594, %v576
        %v604 = vmul.f32 %v594, %v578
        %v605 = vmul.f32 %v599, %v580
        %v606 = vmul.f32 %v599, %v582
        %v607 = vld [vmem:[%s5] sm:$0xff]
        %v608 = vld [vmem:[%s5 + $0x8] sm:$0xff]
        %v609 = vld [vmem:[%s5 + $0x10] sm:$0xff]
        %611 = vset.pattern.permute.xlu0 0
        %612 = vperm.xlu0 %611, %v607
        %v613 = vpop.permute.xlu0 %612
        %616 = vset.pattern.permute.xlu0 0
        %617 = vperm.xlu0 %616, %v608
        %v618 = vpop.permute.xlu0 %617
        %621 = vset.pattern.permute.xlu0 0
        %622 = vperm.xlu0 %621, %v609
        %v623 = vpop.permute.xlu0 %622
        %v625 = vadd.f32 %v601, %v613
        %v626 = vadd.f32 %v602, %v613
        %v627 = vadd.f32 %v603, %v618
        %v628 = vadd.f32 %v604, %v618
        %v629 = vadd.f32 %v605, %v623
        %v630 = vadd.f32 %v606, %v623
        %v631 = vmul.f32 %v625, %v572
        %v632 = vmul.f32 %v626, %v574
        %v633 = vmul.f32 %v627, %v576
        %v634 = vmul.f32 %v628, %v578
        %v635 = vmul.f32 %v629, %v580
        %v636 = vmul.f32 %v630, %v582
        %v637 = vld [vmem:[%s6] sm:$0xff]
        %v638 = vld [vmem:[%s6 + $0x8] sm:$0xff]
        %v639 = vld [vmem:[%s6 + $0x10] sm:$0xff]
        %641 = vset.pattern.permute.xlu0 0
        %642 = vperm.xlu0 %641, %v637
        %v643 = vpop.permute.xlu0 %642
        %646 = vset.pattern.permute.xlu0 0
        %647 = vperm.xlu0 %646, %v638
        %v648 = vpop.permute.xlu0 %647
        %651 = vset.pattern.permute.xlu0 0
        %652 = vperm.xlu0 %651, %v639
        %v653 = vpop.permute.xlu0 %652
        %v655 = vadd.f32 %v631, %v643
        %v656 = vadd.f32 %v632, %v643
        %v657 = vadd.f32 %v633, %v648
        %v658 = vadd.f32 %v634, %v648
        %v659 = vadd.f32 %v635, %v653
        %v660 = vadd.f32 %v636, %v653
        %v661 = vld [vmem:[%s7] sm:$0xff]
        %v662 = vld [vmem:[%s7 + $0x8] sm:$0xff]
        %v663 = vld [vmem:[%s7 + $0x10] sm:$0xff]
        %v664 = vld [vmem:[%s421] ss:$2 sm:$0x3]
        %666 = vset.pattern.permute.xlu0 0
        %667 = vperm.xlu0 %666, %v661
        %v668 = vpop.permute.xlu0 %667
        %671 = vset.pattern.permute.xlu0 0
        %672 = vperm.xlu0 %671, %v662
        %v673 = vpop.permute.xlu0 %672
        %676 = vset.pattern.permute.xlu0 0
        %677 = vperm.xlu0 %676, %v663
        %v678 = vpop.permute.xlu0 %677
        %v681 = vlaneseq
        %v682 = vshrl.u32 %v681, 7
        %v683 = vsub.s32 0, %v682
        %v684 = vrot.slane %v664, %v683
        %v685 = vlaneseq
        %v686 = vshrl.u32 %v685, 7
        %v687 = vsub.s32 1, %v686
        %v688 = vrot.slane %v664, %v687
        %v691 = vmul.f32 %v668, %v684
        %v692 = vmul.f32 %v668, %v688
        %v693 = vmul.f32 %v673, %v684
        %v694 = vmul.f32 %v673, %v688
        %v695 = vmul.f32 %v678, %v684
        %v696 = vmul.f32 %v678, %v688
        %v697 = vadd.f32 %v655, %v691
        %v698 = vadd.f32 %v656, %v692
        %v699 = vadd.f32 %v657, %v693
        %v700 = vadd.f32 %v658, %v694
        %v701 = vadd.f32 %v659, %v695
        %v702 = vadd.f32 %v660, %v696
        %v703 = vld [vmem:[%s8] sm:$0xff]
        %v704 = vld [vmem:[%s8 + $0x8] sm:$0xff]
        %v705 = vld [vmem:[%s8 + $0x10] sm:$0xff]
        %s706 = scalar_lea.vmem %s421, 1
        %v707 = vld [vmem:[%s706] ss:$2 sm:$0x3]
        %709 = vset.pattern.permute.xlu0 0
        %710 = vperm.xlu0 %709, %v703
        %v711 = vpop.permute.xlu0 %710
        %714 = vset.pattern.permute.xlu0 0
        %715 = vperm.xlu0 %714, %v704
        %v716 = vpop.permute.xlu0 %715
        %719 = vset.pattern.permute.xlu0 0
        %720 = vperm.xlu0 %719, %v705
        %v721 = vpop.permute.xlu0 %720
        %v724 = vlaneseq
        %v725 = vshrl.u32 %v724, 7
        %v726 = vsub.s32 0, %v725
        %v727 = vrot.slane %v707, %v726
        %v728 = vlaneseq
        %v729 = vshrl.u32 %v728, 7
        %v730 = vsub.s32 1, %v729
        %v731 = vrot.slane %v707, %v730
        %v734 = vmul.f32 %v711, %v727
        %v735 = vmul.f32 %v711, %v731
        %v736 = vmul.f32 %v716, %v727
        %v737 = vmul.f32 %v716, %v731
        %v738 = vmul.f32 %v721, %v727
        %v739 = vmul.f32 %v721, %v731
        %v740 = vadd.f32 %v697, %v734
        %v741 = vadd.f32 %v698, %v735
        %v742 = vadd.f32 %v699, %v736
        %v743 = vadd.f32 %v700, %v737
        %v744 = vadd.f32 %v701, %v738
        %v745 = vadd.f32 %v702, %v739
        %746 = vst [vmem:[%s406] sm:$0xff] %v740
        %747 = vst [vmem:[%s406 + $0x8] sm:$0xff] %v741
        %748 = vst [vmem:[%s406 + $0x10] sm:$0xff] %v742
        %749 = vst [vmem:[%s406 + $0x18] sm:$0xff] %v743
        %750 = vst [vmem:[%s406 + $0x20] sm:$0xff] %v744
        %751 = vst [vmem:[%s406 + $0x28] sm:$0xff] %v745
        %s752 = sand.u32 %s251, 1
        %s753 = scalar_lea.sflag [#allocation3], %s752
        %s754 = sand.u32 %s251, 1
        %s755 = smul.addr %s754, 48
        %s756 = scalar_lea.vmem [#allocation2], %s755
        %s757 = sand.u32 %s279, 1
        %s758 = scalar_lea.sflag [#allocation5], %s757
        %s759 = sand.u32 %s279, 1
        %s760 = smul.addr %s759, 48
        %s761 = scalar_lea.vmem [#allocation4], %s760
        // Predicated region
        $region57: #{tpu_custom_call.1} parent=55 // pred_check
          %p762 = pneg %p261
        $region58: #{tpu_custom_call.1} parent=55 // pred_check_branch
          %764 = sbr.rel (%p762) target = $region60
        $region59: #{tpu_custom_call.1} parent=55 // pred_region
          %s765 = smul.u32 2, %s33
          %s767 = ssub.s32 768, 768
          %768 = vsyncadd %s753, %s767
          %s769 = smul.addr %s32, 6
          %s770 = sadd.s32 %s765, %s769
          %s771 = smul.addr %s770, 128
          %s772 = scalar_lea.hbm %s9, %s771
          %s773 = sshll.u32 %s756, 4
          %s774 = int_to_ptr.vmem [resolvable:$true] %s773
          %779 = dma.vmem_to_hbm [thread:$0]  %s774, 768, %s772, %s753, 256, 256, 16
        $region60: #{tpu_custom_call.1} parent=55 // pred_fallthru
          _
        // Predicated region
        $region61: #{tpu_custom_call.1} parent=55 // pred_check
          %p780 = pneg %p289
        $region62: #{tpu_custom_call.1} parent=55 // pred_check_branch
          %782 = sbr.rel (%p780) target = $region64
        $region63: #{tpu_custom_call.1} parent=55 // pred_region
          %s783 = smul.u32 2, %s33
          %s785 = ssub.s32 768, 768
          %786 = vsyncadd %s758, %s785
          %s787 = smul.addr %s32, 6
          %s788 = sadd.s32 %s783, %s787
          %s789 = smul.addr %s788, 128
          %s790 = scalar_lea.hbm %s10, %s789
          %s791 = sshll.u32 %s761, 4
          %s792 = int_to_ptr.vmem [resolvable:$true] %s791
          %797 = dma.vmem_to_hbm [thread:$0]  %s792, 768, %s790, %s758, 256, 256, 16
        $region64: #{tpu_custom_call.1} parent=55 // pred_fallthru
          _
      $region56: #{tpu_custom_call.1} parent=5 // pred_fallthru
        _
      %p798 = scmp.le.s32.totalorder 2, %s23
      // Predicated region
      $region65: #{tpu_custom_call.1} parent=5 // pred_check
        %p799 = pneg %p798
      $region66: #{tpu_custom_call.1} parent=5 // pred_check_branch
        %801 = sbr.rel (%p799) target = $region68
      $region67: #{tpu_custom_call.1} parent=5 // pred_region
        %s802 = ssub.s32 %s23, 2
        // Predicated region
        $region69: #{tpu_custom_call.1} parent=67 // pred_check
          %p803 = pneg %p267
        $region70: #{tpu_custom_call.1} parent=67 // pred_check_branch
          %805 = sbr.rel (%p803) target = $region72
        $region71: #{tpu_custom_call.1} parent=67 // pred_region
          %s806 = sand.u32 %s252, 1
          %s807 = scalar_lea.sflag [#allocation3], %s806
          %s808 = sand.u32 %s252, 1
          %s809 = smul.addr %s808, 48
          %s810 = scalar_lea.vmem [#allocation2], %s809
          %811 = dma.done %s807, 768
        $region72: #{tpu_custom_call.1} parent=67 // pred_fallthru
          _
        // Predicated region
        $region73: #{tpu_custom_call.1} parent=67 // pred_check
          %p812 = pneg %p295
        $region74: #{tpu_custom_call.1} parent=67 // pred_check_branch
          %814 = sbr.rel (%p812) target = $region76
        $region75: #{tpu_custom_call.1} parent=67 // pred_region
          %s815 = sand.u32 %s280, 1
          %s816 = scalar_lea.sflag [#allocation5], %s815
          %s817 = sand.u32 %s280, 1
          %s818 = smul.addr %s817, 48
          %s819 = scalar_lea.vmem [#allocation4], %s818
          %820 = dma.done %s816, 768
        $region76: #{tpu_custom_call.1} parent=67 // pred_fallthru
          _
      $region68: #{tpu_custom_call.1} parent=5 // pred_fallthru
        _
    $region6: #{tpu_custom_call.1} parent=1 // loop_footer
      %s27 = sadd.s32 1, %s23
    $region7: #{tpu_custom_call.1} parent=1 // loop_footer_branch
      %22 = sbr.rel target = $region3
    $region8: #{tpu_custom_call.1} parent=1 // loop_exit
      _
    %821 = vsyncpa [#allocation3], 1
    %s822 = scalar_lea.sflag [#allocation3], 1
    %823 = vsyncpa %s822, 1
    %824 = vsyncpa [#allocation5], 1
    %s825 = scalar_lea.sflag [#allocation5], 1
    %826 = vsyncpa %s825, 1

</llo_original>
